<compile_context>
chip_gen: v5e
topology: v5e:2x2
jax: 0.10.0
libtpu: 0.0.40
codegen_flags: <defaults>
</compile_context>

<pallas_src>
from functools import partial

import jax
import jax.numpy as jnp
from jax.experimental import pallas as pl
from jax.experimental.pallas import tpu as pltpu

BN_EPS = 1e-5
LEAKY_SLOPE = 0.2


def _round_up(x, m):
    return (x + m - 1) // m * m


def _pad_to(x, shape):
    pads = [(0, t - s) for s, t in zip(x.shape, shape)]
    return jnp.pad(x, pads)


def _vmem_capacity_bytes():
    try:
        return int(pltpu.get_tpu_info().vmem_capacity_bytes)
    except Exception:
        return 64 * 1024 * 1024  # conservative default (v7x-sized)


def _pick_batch_tile(B, d_in, d_out, weight_bytes, vmem_bytes, max_tile):
    """Largest batch tile such that double-buffered activation tiles + resident
    weights stay comfortably inside VMEM."""
    budget = max(vmem_bytes // 2 - weight_bytes, 512 * 1024)
    per_row = 4 * (d_in + d_out + 1) * 2  # f32; in + out + fm tiles, double buffered
    tb = max(budget // per_row, 8)
    tb = min(tb, max_tile, _round_up(B, 8))
    if tb >= 128:
        tb = (tb // 128) * 128            # MXU-friendly M dimension
    else:
        tb = _round_up(tb, 8)
    return int(tb)


def deepfm_kernel(flat_ref, fm1_ref, mask_ref,
                  s1_ref, sh1_ref, w1_ref, b1_ref,
                  s2_ref, sh2_ref, w2_ref, b2_ref,
                  out_ref, *, residual0, residual1):
    flat = flat_ref[...]              # (TB, D_pad)   flattened embeddings (zero-padded)
    order1 = fm1_ref[...]             # (TB, 1)       pre-reduced linear part

    # ---------------- FM part (lane-dense) ----------------
    # sum over all features of x^2
    sq_sum = jnp.sum(flat * flat, axis=1, keepdims=True)                       # (TB, 1)
    # per-field sums via a tiny block-diagonal ones matmul (rides the MXU)
    s_field = jnp.dot(flat, mask_ref[...], preferred_element_type=jnp.float32)  # (TB, F)
    order2 = jnp.sum(s_field * s_field, axis=1, keepdims=True) - sq_sum         # (TB, 1)
    fm = order1 + 0.5 * order2                                                   # (TB, 1)

    # ---------------- Deep part ----------------
    # layer 0: BN (pre-folded scale/shift) -> Linear -> LeakyReLU [-> residual]
    x_bn = flat * s1_ref[...] + sh1_ref[...]
    h = jnp.dot(x_bn, w1_ref[...], preferred_element_type=jnp.float32) + b1_ref[...]
    h = jnp.where(h > 0, h, LEAKY_SLOPE * h)
    if residual0:
        h = h + x_bn

    # layer 1: BN -> Dropout(eval = identity) -> Linear [-> residual]
    h_bn = h * s2_ref[...] + sh2_ref[...]
    z = jnp.dot(h_bn, w2_ref[...], preferred_element_type=jnp.float32) + b2_ref[...]
    if residual1:
        z = z + h_bn

    out_ref[...] = z + fm


def deepfm_forward(ids, params, *, max_batch_tile=512):
    emb_tables = params["emb_tables"]   # (F, V, E)
    lin_tables = params["lin_tables"]   # (F, V, 1)
    B, F = ids.shape
    E = emb_tables.shape[-1]
    D = F * E
    D1 = params["w1"].shape[1]
    D2 = params["w2"].shape[1]

    # ---- FieldEncoder glue (embedding gather); eval-mode dropout is identity ----
    field_idx = jnp.arange(F)[None, :]
    flat = emb_tables[field_idx, ids].reshape(B, D)                       # (B, D)
    order1 = jnp.sum(lin_tables[field_idx, ids], axis=(1, 2))[:, None]    # (B, 1)

    # ---- fold BN (eval-mode, running stats) into scale/shift once, in glue ----
    inv1 = 1.0 / jnp.sqrt(params["rv1"] + BN_EPS)
    scale1 = params["g1"] * inv1
    shift1 = params["be1"] - params["rm1"] * scale1
    inv2 = 1.0 / jnp.sqrt(params["rv2"] + BN_EPS)
    scale2 = params["g2"] * inv2
    shift2 = params["be2"] - params["rm2"] * scale2

    residual0 = (D == D1)
    residual1 = (D1 == D2)

    # ---- pad feature dims to lane-dense multiples of 128 (zero padding is exact) ----
    D_pad = _round_up(D, 128)
    D1_pad = _round_up(D1, 128)
    D2_pad = _round_up(D2, 128)

    # ---- batch tiling sized from the chip's VMEM capacity ----
    vmem_bytes = _vmem_capacity_bytes()
    weight_bytes = 4 * (D_pad * D1_pad + D1_pad * D2_pad + D_pad * F
                        + 2 * D_pad + 3 * D1_pad + D2_pad)
    TB = _pick_batch_tile(B, D_pad, D2_pad, weight_bytes, vmem_bytes, max_batch_tile)
    B_pad = _round_up(B, TB)
    vmem_limit = int(min(vmem_bytes * 3 // 4, 96 * 1024 * 1024))

    # ---- padded operands ----
    flat_p = _pad_to(flat, (B_pad, D_pad))
    fm1_p = _pad_to(order1, (B_pad, 1))
    # block-diagonal "ones" mask: column f sums embedding slots of field f
    fm_mask = (jnp.arange(D_pad)[:, None] // E == jnp.arange(F)[None, :]).astype(jnp.float32)
    s1_p = _pad_to(scale1[None, :], (1, D_pad))
    sh1_p = _pad_to(shift1[None, :], (1, D_pad))
    w1_p = _pad_to(params["w1"], (D_pad, D1_pad))
    b1_p = _pad_to(params["b1"][None, :], (1, D1_pad))
    s2_p = _pad_to(scale2[None, :], (1, D1_pad))
    sh2_p = _pad_to(shift2[None, :], (1, D1_pad))
    w2_p = _pad_to(params["w2"], (D1_pad, D2_pad))
    b2_p = _pad_to(params["b2"][None, :], (1, D2_pad))

    kernel = partial(deepfm_kernel, residual0=residual0, residual1=residual1)

    out = pl.pallas_call(
        kernel,
        out_shape=jax.ShapeDtypeStruct((B_pad, D2_pad), jnp.float32),
        grid=(B_pad // TB,),
        in_specs=[
            # per-batch-tile blocks
            pl.BlockSpec((TB, 1 * D_pad), lambda i: (i, 0)),    # flat activations
            pl.BlockSpec((TB, 1), lambda i: (i, 0)),            # order-1 FM score
            # weights / BN vectors: constant block index -> DMA'd once, stay resident
            pl.BlockSpec((D_pad, F), lambda i: (0, 0)),         # FM field mask
            pl.BlockSpec((1, D_pad), lambda i: (0, 0)),         # bn1 scale
            pl.BlockSpec((1, D_pad), lambda i: (0, 0)),         # bn1 shift
            pl.BlockSpec((D_pad, D1_pad), lambda i: (0, 0)),    # W1
            pl.BlockSpec((1, D1_pad), lambda i: (0, 0)),        # b1
            pl.BlockSpec((1, D1_pad), lambda i: (0, 0)),        # bn2 scale
            pl.BlockSpec((1, D1_pad), lambda i: (0, 0)),        # bn2 shift
            pl.BlockSpec((D1_pad, D2_pad), lambda i: (0, 0)),   # W2
            pl.BlockSpec((1, D2_pad), lambda i: (0, 0)),        # b2
        ],
        out_specs=pl.BlockSpec((TB, D2_pad), lambda i: (i, 0)),
        compiler_params=pltpu.CompilerParams(
            dimension_semantics=("parallel",),
            vmem_limit_bytes=vmem_limit),
    )(flat_p, fm1_p, fm_mask, s1_p, sh1_p, w1_p, b1_p, s2_p, sh2_p, w2_p, b2_p)

    return out[:B, :D2]


def reference_forward(ids, params):
    """Pure-JAX reference mirroring the PyTorch eval-mode forward."""
    emb_tables = params["emb_tables"]
    lin_tables = params["lin_tables"]
    B, F = ids.shape
    field_idx = jnp.arange(F)[None, :]
    embs = emb_tables[field_idx, ids]                       # (B, F, E)
    linear_part = lin_tables[field_idx, ids]                # (B, F, 1)

    order1 = jnp.sum(linear_part, axis=(1, 2))
    order2 = jnp.sum(jnp.sum(embs, -1) ** 2, -1) - jnp.sum(embs ** 2, axis=(1, 2))
    fm = order1 + 0.5 * order2

    x = embs.reshape(B, -1)
    x_bn = (x - params["rm1"]) / jnp.sqrt(params["rv1"] + BN_EPS) * params["g1"] + params["be1"]
    h = x_bn @ params["w1"] + params["b1"]
    h = jnp.where(h > 0, h, LEAKY_SLOPE * h)
    if params["w1"].shape[0] == params["w1"].shape[1]:
        h = h + x_bn
    h_bn = (h - params["rm2"]) / jnp.sqrt(params["rv2"] + BN_EPS) * params["g2"] + params["be2"]
    z = h_bn @ params["w2"] + params["b2"]
    if params["w2"].shape[0] == params["w2"].shape[1]:
        z = z + h_bn
    return z + fm[:, None]


def init_params(key, n_fields, vocab, emb_size, net_dims):
    D = n_fields * emb_size
    D1, D2 = net_dims
    ks = jax.random.split(key, 14)
    return {
        "emb_tables": 0.1 * jax.random.normal(ks[0], (n_fields, vocab, emb_size), jnp.float32),
        "lin_tables": 0.1 * jax.random.normal(ks[1], (n_fields, vocab, 1), jnp.float32),
        # LinearBlock 0 : BN(D) (non-trivial running stats) + Linear(D, D1)
        "g1": 1.0 + 0.1 * jax.random.normal(ks[2], (D,), jnp.float32),
        "be1": 0.1 * jax.random.normal(ks[3], (D,), jnp.float32),
        "rm1": 0.1 * jax.random.normal(ks[4], (D,), jnp.float32),
        "rv1": 1.0 + 0.1 * jax.random.uniform(ks[5], (D,), jnp.float32),
        "w1": 0.1 * jax.random.normal(ks[6], (D, D1), jnp.float32),
        "b1": 0.1 * jax.random.normal(ks[7], (D1,), jnp.float32),
        # LinearBlock 1 : BN(D1) + Linear(D1, D2)
        "g2": 1.0 + 0.1 * jax.random.normal(ks[8], (D1,), jnp.float32),
        "be2": 0.1 * jax.random.normal(ks[9], (D1,), jnp.float32),
        "rm2": 0.1 * jax.random.normal(ks[10], (D1,), jnp.float32),
        "rv2": 1.0 + 0.1 * jax.random.uniform(ks[11], (D1,), jnp.float32),
        "w2": 0.1 * jax.random.normal(ks[12], (D1, D2), jnp.float32),
        "b2": 0.1 * jax.random.normal(ks[13], (D2,), jnp.float32),
    }


if __name__ == "__main__":
    B, n_fields, vocab, emb_size = 256, 16, 32, 8
    net_dims = (n_fields * emb_size, 32)   # first layer square -> residual active

    key = jax.random.PRNGKey(0)
    k_ids, k_params = jax.random.split(key)
    ids = jax.random.randint(k_ids, (B, n_fields), 0, vocab, dtype=jnp.int32)
    params = init_params(k_params, n_fields, vocab, emb_size, net_dims)

    # max_batch_tile=128 -> grid of 2 batch tiles here (exercises pipelining/megacore)
    out = deepfm_forward(ids, params, max_batch_tile=128)
    out = jax.block_until_ready(out)

    ref = reference_forward(ids, params)
    assert out.shape == (B, net_dims[-1])
    assert jnp.allclose(out, ref, atol=1e-4, rtol=1e-4), (out, ref)
    print("KERNEL_OK")
</pallas_src>

<mosaic_0001>
module attributes {stable_mosaic.version = 11 : i64} {
  func.func @deepfm_kernel(%arg0: i32, %arg1: memref<128x128xf32, #tpu.memory_space<vmem>>, %arg2: memref<128x1xf32, #tpu.memory_space<vmem>>, %arg3: memref<128x16xf32, #tpu.memory_space<vmem>>, %arg4: memref<1x128xf32, #tpu.memory_space<vmem>>, %arg5: memref<1x128xf32, #tpu.memory_space<vmem>>, %arg6: memref<128x128xf32, #tpu.memory_space<vmem>>, %arg7: memref<1x128xf32, #tpu.memory_space<vmem>>, %arg8: memref<1x128xf32, #tpu.memory_space<vmem>>, %arg9: memref<1x128xf32, #tpu.memory_space<vmem>>, %arg10: memref<128x128xf32, #tpu.memory_space<vmem>>, %arg11: memref<1x128xf32, #tpu.memory_space<vmem>>, %arg12: memref<128x128xf32, #tpu.memory_space<vmem>>) attributes {dimension_semantics = [#tpu.dimension_semantics<parallel>], iteration_bounds = array<i64: 2>, scalar_prefetch = 0 : i64, scratch_operands = 0 : i64, tpu.core_type = #tpu.core_type<tc>, window_params = [{transform_indices = @transform_0, window_bounds = array<i64: 128, 128>}, {transform_indices = @transform_1, window_bounds = array<i64: 128, 1>}, {pipeline_mode = #tpu.pipeline_mode<synchronous>, transform_indices = @transform_2, window_bounds = array<i64: 128, 16>}, {pipeline_mode = #tpu.pipeline_mode<synchronous>, transform_indices = @transform_3, window_bounds = array<i64: 1, 128>}, {pipeline_mode = #tpu.pipeline_mode<synchronous>, transform_indices = @transform_4, window_bounds = array<i64: 1, 128>}, {pipeline_mode = #tpu.pipeline_mode<synchronous>, transform_indices = @transform_5, window_bounds = array<i64: 128, 128>}, {pipeline_mode = #tpu.pipeline_mode<synchronous>, transform_indices = @transform_6, window_bounds = array<i64: 1, 128>}, {pipeline_mode = #tpu.pipeline_mode<synchronous>, transform_indices = @transform_7, window_bounds = array<i64: 1, 128>}, {pipeline_mode = #tpu.pipeline_mode<synchronous>, transform_indices = @transform_8, window_bounds = array<i64: 1, 128>}, {pipeline_mode = #tpu.pipeline_mode<synchronous>, transform_indices = @transform_9, window_bounds = array<i64: 128, 128>}, {pipeline_mode = #tpu.pipeline_mode<synchronous>, transform_indices = @transform_10, window_bounds = array<i64: 1, 128>}, {transform_indices = @transform_11, window_bounds = array<i64: 128, 128>}]} {
    %c0 = arith.constant 0 : index
    %c0_0 = arith.constant 0 : index
    %0 = vector.load %arg1[%c0, %c0_0] : memref<128x128xf32, #tpu.memory_space<vmem>>, vector<128x128xf32>
    %c0_1 = arith.constant 0 : index
    %c0_2 = arith.constant 0 : index
    %1 = vector.load %arg2[%c0_1, %c0_2] : memref<128x1xf32, #tpu.memory_space<vmem>>, vector<128x1xf32>
    %2 = arith.mulf %0, %0 : vector<128x128xf32>
    %cst = arith.constant dense<0.000000e+00> : vector<128xf32>
    %3 = vector.multi_reduction <add>, %2, %cst [1] : vector<128x128xf32> to vector<128xf32>
    %4 = vector.shape_cast %3 : vector<128xf32> to vector<128x1xf32>
    %c0_3 = arith.constant 0 : index
    %c0_4 = arith.constant 0 : index
    %5 = vector.load %arg3[%c0_3, %c0_4] : memref<128x16xf32, #tpu.memory_space<vmem>>, vector<128x16xf32>
    %cst_5 = arith.constant dense<0.000000e+00> : vector<128x16xf32>
    %6 = tpu.matmul %0, %5, %cst_5 {dimension_numbers = #tpu.dot_dimension_numbers<[1], [0], [0], [1], [0, 0, 1, 1], [], []>} : vector<128x128xf32>, vector<128x16xf32>, vector<128x16xf32> -> vector<128x16xf32>
    %7 = arith.mulf %6, %6 : vector<128x16xf32>
    %cst_6 = arith.constant dense<0.000000e+00> : vector<128xf32>
    %8 = vector.multi_reduction <add>, %7, %cst_6 [1] : vector<128x16xf32> to vector<128xf32>
    %9 = vector.shape_cast %8 : vector<128xf32> to vector<128x1xf32>
    %10 = arith.subf %9, %4 : vector<128x1xf32>
    %cst_7 = arith.constant 5.000000e-01 : f32
    %11 = vector.broadcast %cst_7 : f32 to vector<128x1xf32>
    %12 = arith.mulf %11, %10 : vector<128x1xf32>
    %13 = arith.addf %1, %12 : vector<128x1xf32>
    %c0_8 = arith.constant 0 : index
    %c0_9 = arith.constant 0 : index
    %14 = vector.load %arg4[%c0_8, %c0_9] : memref<1x128xf32, #tpu.memory_space<vmem>>, vector<1x128xf32>
    %15 = vector.broadcast %14 : vector<1x128xf32> to vector<128x128xf32>
    %16 = arith.mulf %0, %15 : vector<128x128xf32>
    %c0_10 = arith.constant 0 : index
    %c0_11 = arith.constant 0 : index
    %17 = vector.load %arg5[%c0_10, %c0_11] : memref<1x128xf32, #tpu.memory_space<vmem>>, vector<1x128xf32>
    %18 = vector.broadcast %17 : vector<1x128xf32> to vector<128x128xf32>
    %19 = arith.addf %16, %18 : vector<128x128xf32>
    %c0_12 = arith.constant 0 : index
    %c0_13 = arith.constant 0 : index
    %20 = vector.load %arg6[%c0_12, %c0_13] : memref<128x128xf32, #tpu.memory_space<vmem>>, vector<128x128xf32>
    %cst_14 = arith.constant dense<0.000000e+00> : vector<128x128xf32>
    %21 = tpu.matmul %19, %20, %cst_14 {dimension_numbers = #tpu.dot_dimension_numbers<[1], [0], [0], [1], [0, 0, 1, 1], [], []>} : vector<128x128xf32>, vector<128x128xf32>, vector<128x128xf32> -> vector<128x128xf32>
    %c0_15 = arith.constant 0 : index
    %c0_16 = arith.constant 0 : index
    %22 = vector.load %arg7[%c0_15, %c0_16] : memref<1x128xf32, #tpu.memory_space<vmem>>, vector<1x128xf32>
    %23 = vector.broadcast %22 : vector<1x128xf32> to vector<128x128xf32>
    %24 = arith.addf %21, %23 : vector<128x128xf32>
    %cst_17 = arith.constant 0.000000e+00 : f32
    %25 = vector.broadcast %cst_17 : f32 to vector<128x128xf32>
    %26 = arith.cmpf ogt, %24, %25 : vector<128x128xf32>
    %cst_18 = arith.constant 2.000000e-01 : f32
    %27 = vector.broadcast %cst_18 : f32 to vector<128x128xf32>
    %28 = arith.mulf %27, %24 : vector<128x128xf32>
    %29 = arith.select %26, %24, %28 : vector<128x128xi1>, vector<128x128xf32>
    %30 = arith.addf %29, %19 : vector<128x128xf32>
    %c0_19 = arith.constant 0 : index
    %c0_20 = arith.constant 0 : index
    %31 = vector.load %arg8[%c0_19, %c0_20] : memref<1x128xf32, #tpu.memory_space<vmem>>, vector<1x128xf32>
    %32 = vector.broadcast %31 : vector<1x128xf32> to vector<128x128xf32>
    %33 = arith.mulf %30, %32 : vector<128x128xf32>
    %c0_21 = arith.constant 0 : index
    %c0_22 = arith.constant 0 : index
    %34 = vector.load %arg9[%c0_21, %c0_22] : memref<1x128xf32, #tpu.memory_space<vmem>>, vector<1x128xf32>
    %35 = vector.broadcast %34 : vector<1x128xf32> to vector<128x128xf32>
    %36 = arith.addf %33, %35 : vector<128x128xf32>
    %c0_23 = arith.constant 0 : index
    %c0_24 = arith.constant 0 : index
    %37 = vector.load %arg10[%c0_23, %c0_24] : memref<128x128xf32, #tpu.memory_space<vmem>>, vector<128x128xf32>
    %cst_25 = arith.constant dense<0.000000e+00> : vector<128x128xf32>
    %38 = tpu.matmul %36, %37, %cst_25 {dimension_numbers = #tpu.dot_dimension_numbers<[1], [0], [0], [1], [0, 0, 1, 1], [], []>} : vector<128x128xf32>, vector<128x128xf32>, vector<128x128xf32> -> vector<128x128xf32>
    %c0_26 = arith.constant 0 : index
    %c0_27 = arith.constant 0 : index
    %39 = vector.load %arg11[%c0_26, %c0_27] : memref<1x128xf32, #tpu.memory_space<vmem>>, vector<1x128xf32>
    %40 = vector.broadcast %39 : vector<1x128xf32> to vector<128x128xf32>
    %41 = arith.addf %38, %40 : vector<128x128xf32>
    %42 = vector.broadcast %13 : vector<128x1xf32> to vector<128x128xf32>
    %43 = arith.addf %41, %42 : vector<128x128xf32>
    %c0_28 = arith.constant 0 : index
    %c0_29 = arith.constant 0 : index
    %44 = vector.load %arg12[%c0_28, %c0_29] : memref<128x128xf32, #tpu.memory_space<vmem>>, vector<128x128xf32>
    tpu.vector_store %arg12[%c0_28, %c0_29], %43 {strides = array<i32>} : memref<128x128xf32, #tpu.memory_space<vmem>>, vector<128x128xf32>,
    return
  }
  func.func @transform_0(%arg0: i32) -> (i32, i32) {
    %c0_i32 = arith.constant 0 : i32
    %c0_i32_0 = arith.constant 0 : i32
    return %arg0, %c0_i32 : i32, i32
  }
  func.func @transform_1(%arg0: i32) -> (i32, i32) {
    %c0_i32 = arith.constant 0 : i32
    %c0_i32_0 = arith.constant 0 : i32
    return %arg0, %c0_i32 : i32, i32
  }
  func.func @transform_2(%arg0: i32) -> (i32, i32) {
    %c0_i32 = arith.constant 0 : i32
    %c0_i32_0 = arith.constant 0 : i32
    %c0_i32_1 = arith.constant 0 : i32
    return %c0_i32, %c0_i32_0 : i32, i32
  }
  func.func @transform_3(%arg0: i32) -> (i32, i32) {
    %c0_i32 = arith.constant 0 : i32
    %c0_i32_0 = arith.constant 0 : i32
    %c0_i32_1 = arith.constant 0 : i32
    return %c0_i32, %c0_i32_0 : i32, i32
  }
  func.func @transform_4(%arg0: i32) -> (i32, i32) {
    %c0_i32 = arith.constant 0 : i32
    %c0_i32_0 = arith.constant 0 : i32
    %c0_i32_1 = arith.constant 0 : i32
    return %c0_i32, %c0_i32_0 : i32, i32
  }
  func.func @transform_5(%arg0: i32) -> (i32, i32) {
    %c0_i32 = arith.constant 0 : i32
    %c0_i32_0 = arith.constant 0 : i32
    %c0_i32_1 = arith.constant 0 : i32
    return %c0_i32, %c0_i32_0 : i32, i32
  }
  func.func @transform_6(%arg0: i32) -> (i32, i32) {
    %c0_i32 = arith.constant 0 : i32
    %c0_i32_0 = arith.constant 0 : i32
    %c0_i32_1 = arith.constant 0 : i32
    return %c0_i32, %c0_i32_0 : i32, i32
  }
  func.func @transform_7(%arg0: i32) -> (i32, i32) {
    %c0_i32 = arith.constant 0 : i32
    %c0_i32_0 = arith.constant 0 : i32
    %c0_i32_1 = arith.constant 0 : i32
    return %c0_i32, %c0_i32_0 : i32, i32
  }
  func.func @transform_8(%arg0: i32) -> (i32, i32) {
    %c0_i32 = arith.constant 0 : i32
    %c0_i32_0 = arith.constant 0 : i32
    %c0_i32_1 = arith.constant 0 : i32
    return %c0_i32, %c0_i32_0 : i32, i32
  }
  func.func @transform_9(%arg0: i32) -> (i32, i32) {
    %c0_i32 = arith.constant 0 : i32
    %c0_i32_0 = arith.constant 0 : i32
    %c0_i32_1 = arith.constant 0 : i32
    return %c0_i32, %c0_i32_0 : i32, i32
  }
  func.func @transform_10(%arg0: i32) -> (i32, i32) {
    %c0_i32 = arith.constant 0 : i32
    %c0_i32_0 = arith.constant 0 : i32
    %c0_i32_1 = arith.constant 0 : i32
    return %c0_i32, %c0_i32_0 : i32, i32
  }
  func.func @transform_11(%arg0: i32) -> (i32, i32) {
    %c0_i32 = arith.constant 0 : i32
    %c0_i32_0 = arith.constant 0 : i32
    return %arg0, %c0_i32 : i32, i32
  }
}

</mosaic_0001>

<llo_original>
// kernel: tpu_custom_call.1
$region0: #{tpu_custom_call.1}
  #allocation0 [shape = 'u32[]', space=smem, size = 0x4, offset = 0x4, fixed_abs, tag = 'smem constant byte address 0x4 - core index']
  #allocation1 [shape = 'u32[72,128]{1,0:T(1,128)}', space=vmem, size = 0x9000, scoped, tag = 'internal scratch']
  %s0 = inlined_call_operand.vmem [shape: f32[256,128], index: 0, kind: input, shape index: {}]
  %s1 = inlined_call_operand.vmem [shape: f32[256,1], index: 1, kind: input, shape index: {}]
  %s2 = inlined_call_operand.vmem [shape: f32[128,16], index: 2, kind: input, shape index: {}]
  %s3 = inlined_call_operand.vmem [shape: f32[1,128], index: 3, kind: input, shape index: {}]
  %s4 = inlined_call_operand.vmem [shape: f32[1,128], index: 4, kind: input, shape index: {}]
  %s5 = inlined_call_operand.vmem [shape: f32[128,128], index: 5, kind: input, shape index: {}]
  %s6 = inlined_call_operand.vmem [shape: f32[1,128], index: 6, kind: input, shape index: {}]
  %s7 = inlined_call_operand.vmem [shape: f32[1,128], index: 7, kind: input, shape index: {}]
  %s8 = inlined_call_operand.vmem [shape: f32[1,128], index: 8, kind: input, shape index: {}]
  %s9 = inlined_call_operand.hbm [shape: f32[128,128], index: 9, kind: input, shape index: {}]
  %s10 = inlined_call_operand.vmem [shape: f32[1,128], index: 10, kind: input, shape index: {}]
  %s11 = inlined_call_operand.hbm [shape: f32[256,128], index: 11, kind: output, shape index: {}]
  %s12 = sld [smem:[#allocation0]]
  $region81: #{tpu_custom_call.1} parent=0
    _
  %s14 = ssub.s32 1, %s12
  %s15 = scalar_select 0, %s14, %s12
  $region1: #{tpu_custom_call.1} parent=0
    #allocation2 [shape = 'u8[65536]{0}', space=vmem, size = 0x10000, scoped, tag = 'input window, operand 9, single buffered']
    #allocation3 [shape = 's32[2]{0}', space=sflag, size = 0x8, scoped, tag = 'scoped memory for tpu_custom_call.1']
    #allocation4 [shape = 's32[2]{0}', space=sflag, size = 0x8, scoped, tag = 'scoped memory for tpu_custom_call.1']
    #allocation5 [shape = 'u8[131072]{0}', space=vmem, size = 0x20000, scoped, tag = 'output window, operand 0']
    %16 = vsyncpa [#allocation3], 0
    %17 = vsyncpa [#allocation4], 0
    %s18 = scalar_lea.sflag [#allocation4], 1
    %19 = vsyncpa %s18, 0
    loop: start=0, step=1, limit=4
    $region2: #{tpu_custom_call.1} parent=1 // loop_pre_header
      _
    $region3: #{tpu_custom_call.1} parent=1 // loop_header
      %s21 = sphi 0, %s25
      %p22 = scmp.ge.s32.totalorder %s21, 4
      %s31 = sphi 0, %s33
      %s34 = sphi 0, %s31
      %s35 = sphi 0, %s34
      %s51 = sphi 0, %s35
      %s57 = sphi 0, %s59
      %s60 = sphi 0, %s57
      %s61 = sphi 0, %s60
      %s77 = sphi 0, %s61
      %s81 = sphi 0, %s81
      %s83 = sphi 0, %s81
      %s84 = sphi 0, %s83
      %s98 = sphi 0, %s84
      %s102 = sphi 0, %s102
      %s104 = sphi 0, %s102
      %s105 = sphi 0, %s104
      %s119 = sphi 0, %s105
      %s123 = sphi 0, %s123
      %s125 = sphi 0, %s123
      %s126 = sphi 0, %s125
      %s140 = sphi 0, %s126
      %s144 = sphi 0, %s144
      %s146 = sphi 0, %s144
      %s147 = sphi 0, %s146
      %s161 = sphi 0, %s147
      %s165 = sphi 0, %s165
      %s167 = sphi 0, %s165
      %s168 = sphi 0, %s167
      %s182 = sphi 0, %s168
      %s186 = sphi 0, %s186
      %s188 = sphi 0, %s186
      %s189 = sphi 0, %s188
      %s203 = sphi 0, %s189
      %s207 = sphi 0, %s207
      %s209 = sphi 0, %s207
      %s210 = sphi 0, %s209
      %s224 = sphi 0, %s210
      %s228 = sphi 0, %s228
      %s230 = sphi 0, %s228
      %s231 = sphi 0, %s230
      %s245 = sphi 0, %s231
      %s249 = sphi 0, %s249
      %s251 = sphi 0, %s249
      %s252 = sphi 0, %s251
      %s266 = sphi 0, %s252
      %s272 = sphi 0, %s274
      %s275 = sphi 0, %s272
      %s276 = sphi 0, %s275
      %s292 = sphi 0, %s276
    $region4: #{tpu_custom_call.1} parent=1 // loop_header_branch
      %24 = sbr.rel (%p22) target = $region8
    $region5: #{tpu_custom_call.1} parent=1 // loop_body
      %s26 = ssub.s32 %s21, 1
      %s27 = ssub.s32 %s21, 2
      %s28 = sadd.s32 %s21, 1
      %s29 = ssub.s32 %s21, %s28
      %p30 = scmp.eq.s32.totalorder %s29, 0
      %s32 = sadd.s32 %s31, 1
      %s33 = scalar_select %p30, %s31, %s32
      %p36 = pneg %p30
      %p37 = scmp.eq.s32.totalorder %s21, 1
      %p38 = por %p36, %p37
      %p39 = scmp.ne.s32.totalorder %s31, %s34
      %p40 = scmp.eq.s32.totalorder %s21, 0
      %p41 = por %p39, %p40
      %p42 = scmp.ne.s32.totalorder %s31, %s34
      %p43 = scmp.eq.s32.totalorder %s26, 1
      %p44 = por %p42, %p43
      %p45 = scmp.ne.s32.totalorder %s34, %s35
      %p46 = scmp.eq.s32.totalorder %s26, 0
      %p47 = por %p45, %p46
      %p48 = scmp.ne.s32.totalorder %s34, %s35
      %p49 = scmp.eq.s32.totalorder %s27, 1
      %p50 = por %p48, %p49
      %p52 = scmp.ne.s32.totalorder %s35, %s51
      %p53 = scmp.eq.s32.totalorder %s27, 0
      %p54 = por %p52, %p53
      %s55 = ssub.s32 %s21, %s28
      %p56 = scmp.eq.s32.totalorder %s55, 0
      %s58 = sadd.s32 %s57, 1
      %s59 = scalar_select %p56, %s57, %s58
      %p62 = pneg %p56
      %p63 = scmp.eq.s32.totalorder %s21, 1
      %p64 = por %p62, %p63
      %p65 = scmp.ne.s32.totalorder %s57, %s60
      %p66 = scmp.eq.s32.totalorder %s21, 0
      %p67 = por %p65, %p66
      %p68 = scmp.ne.s32.totalorder %s57, %s60
      %p69 = scmp.eq.s32.totalorder %s26, 1
      %p70 = por %p68, %p69
      %p71 = scmp.ne.s32.totalorder %s60, %s61
      %p72 = scmp.eq.s32.totalorder %s26, 0
      %p73 = por %p71, %p72
      %p74 = scmp.ne.s32.totalorder %s60, %s61
      %p75 = scmp.eq.s32.totalorder %s27, 1
      %p76 = por %p74, %p75
      %p78 = scmp.ne.s32.totalorder %s61, %s77
      %p79 = scmp.eq.s32.totalorder %s27, 0
      %p80 = por %p78, %p79
      %s82 = sadd.s32 %s81, 1
      %p85 = scmp.eq.s32.totalorder %s21, 1
      %p86 = scmp.ne.s32.totalorder %s81, %s83
      %p87 = scmp.eq.s32.totalorder %s21, 0
      %p88 = por %p86, %p87
      %p89 = scmp.ne.s32.totalorder %s81, %s83
      %p90 = scmp.eq.s32.totalorder %s26, 1
      %p91 = por %p89, %p90
      %p92 = scmp.ne.s32.totalorder %s83, %s84
      %p93 = scmp.eq.s32.totalorder %s26, 0
      %p94 = por %p92, %p93
      %p95 = scmp.ne.s32.totalorder %s83, %s84
      %p96 = scmp.eq.s32.totalorder %s27, 1
      %p97 = por %p95, %p96
      %p99 = scmp.ne.s32.totalorder %s84, %s98
      %p100 = scmp.eq.s32.totalorder %s27, 0
      %p101 = por %p99, %p100
      %s103 = sadd.s32 %s102, 1
      %p106 = scmp.eq.s32.totalorder %s21, 1
      %p107 = scmp.ne.s32.totalorder %s102, %s104
      %p108 = scmp.eq.s32.totalorder %s21, 0
      %p109 = por %p107, %p108
      %p110 = scmp.ne.s32.totalorder %s102, %s104
      %p111 = scmp.eq.s32.totalorder %s26, 1
      %p112 = por %p110, %p111
      %p113 = scmp.ne.s32.totalorder %s104, %s105
      %p114 = scmp.eq.s32.totalorder %s26, 0
      %p115 = por %p113, %p114
      %p116 = scmp.ne.s32.totalorder %s104, %s105
      %p117 = scmp.eq.s32.totalorder %s27, 1
      %p118 = por %p116, %p117
      %p120 = scmp.ne.s32.totalorder %s105, %s119
      %p121 = scmp.eq.s32.totalorder %s27, 0
      %p122 = por %p120, %p121
      %s124 = sadd.s32 %s123, 1
      %p127 = scmp.eq.s32.totalorder %s21, 1
      %p128 = scmp.ne.s32.totalorder %s123, %s125
      %p129 = scmp.eq.s32.totalorder %s21, 0
      %p130 = por %p128, %p129
      %p131 = scmp.ne.s32.totalorder %s123, %s125
      %p132 = scmp.eq.s32.totalorder %s26, 1
      %p133 = por %p131, %p132
      %p134 = scmp.ne.s32.totalorder %s125, %s126
      %p135 = scmp.eq.s32.totalorder %s26, 0
      %p136 = por %p134, %p135
      %p137 = scmp.ne.s32.totalorder %s125, %s126
      %p138 = scmp.eq.s32.totalorder %s27, 1
      %p139 = por %p137, %p138
      %p141 = scmp.ne.s32.totalorder %s126, %s140
      %p142 = scmp.eq.s32.totalorder %s27, 0
      %p143 = por %p141, %p142
      %s145 = sadd.s32 %s144, 1
      %p148 = scmp.eq.s32.totalorder %s21, 1
      %p149 = scmp.ne.s32.totalorder %s144, %s146
      %p150 = scmp.eq.s32.totalorder %s21, 0
      %p151 = por %p149, %p150
      %p152 = scmp.ne.s32.totalorder %s144, %s146
      %p153 = scmp.eq.s32.totalorder %s26, 1
      %p154 = por %p152, %p153
      %p155 = scmp.ne.s32.totalorder %s146, %s147
      %p156 = scmp.eq.s32.totalorder %s26, 0
      %p157 = por %p155, %p156
      %p158 = scmp.ne.s32.totalorder %s146, %s147
      %p159 = scmp.eq.s32.totalorder %s27, 1
      %p160 = por %p158, %p159
      %p162 = scmp.ne.s32.totalorder %s147, %s161
      %p163 = scmp.eq.s32.totalorder %s27, 0
      %p164 = por %p162, %p163
      %s166 = sadd.s32 %s165, 1
      %p169 = scmp.eq.s32.totalorder %s21, 1
      %p170 = scmp.ne.s32.totalorder %s165, %s167
      %p171 = scmp.eq.s32.totalorder %s21, 0
      %p172 = por %p170, %p171
      %p173 = scmp.ne.s32.totalorder %s165, %s167
      %p174 = scmp.eq.s32.totalorder %s26, 1
      %p175 = por %p173, %p174
      %p176 = scmp.ne.s32.totalorder %s167, %s168
      %p177 = scmp.eq.s32.totalorder %s26, 0
      %p178 = por %p176, %p177
      %p179 = scmp.ne.s32.totalorder %s167, %s168
      %p180 = scmp.eq.s32.totalorder %s27, 1
      %p181 = por %p179, %p180
      %p183 = scmp.ne.s32.totalorder %s168, %s182
      %p184 = scmp.eq.s32.totalorder %s27, 0
      %p185 = por %p183, %p184
      %s187 = sadd.s32 %s186, 1
      %p190 = scmp.eq.s32.totalorder %s21, 1
      %p191 = scmp.ne.s32.totalorder %s186, %s188
      %p192 = scmp.eq.s32.totalorder %s21, 0
      %p193 = por %p191, %p192
      %p194 = scmp.ne.s32.totalorder %s186, %s188
      %p195 = scmp.eq.s32.totalorder %s26, 1
      %p196 = por %p194, %p195
      %p197 = scmp.ne.s32.totalorder %s188, %s189
      %p198 = scmp.eq.s32.totalorder %s26, 0
      %p199 = por %p197, %p198
      %p200 = scmp.ne.s32.totalorder %s188, %s189
      %p201 = scmp.eq.s32.totalorder %s27, 1
      %p202 = por %p200, %p201
      %p204 = scmp.ne.s32.totalorder %s189, %s203
      %p205 = scmp.eq.s32.totalorder %s27, 0
      %p206 = por %p204, %p205
      %s208 = sadd.s32 %s207, 1
      %p211 = scmp.eq.s32.totalorder %s21, 1
      %p212 = scmp.ne.s32.totalorder %s207, %s209
      %p213 = scmp.eq.s32.totalorder %s21, 0
      %p214 = por %p212, %p213
      %p215 = scmp.ne.s32.totalorder %s207, %s209
      %p216 = scmp.eq.s32.totalorder %s26, 1
      %p217 = por %p215, %p216
      %p218 = scmp.ne.s32.totalorder %s209, %s210
      %p219 = scmp.eq.s32.totalorder %s26, 0
      %p220 = por %p218, %p219
      %p221 = scmp.ne.s32.totalorder %s209, %s210
      %p222 = scmp.eq.s32.totalorder %s27, 1
      %p223 = por %p221, %p222
      %p225 = scmp.ne.s32.totalorder %s210, %s224
      %p226 = scmp.eq.s32.totalorder %s27, 0
      %p227 = por %p225, %p226
      %s229 = sadd.s32 %s228, 1
      %p232 = scmp.eq.s32.totalorder %s21, 1
      %p233 = scmp.ne.s32.totalorder %s228, %s230
      %p234 = scmp.eq.s32.totalorder %s21, 0
      %p235 = por %p233, %p234
      %p236 = scmp.ne.s32.totalorder %s228, %s230
      %p237 = scmp.eq.s32.totalorder %s26, 1
      %p238 = por %p236, %p237
      %p239 = scmp.ne.s32.totalorder %s230, %s231
      %p240 = scmp.eq.s32.totalorder %s26, 0
      %p241 = por %p239, %p240
      %p242 = scmp.ne.s32.totalorder %s230, %s231
      %p243 = scmp.eq.s32.totalorder %s27, 1
      %p244 = por %p242, %p243
      %p246 = scmp.ne.s32.totalorder %s231, %s245
      %p247 = scmp.eq.s32.totalorder %s27, 0
      %p248 = por %p246, %p247
      %s250 = sadd.s32 %s249, 1
      %p253 = scmp.eq.s32.totalorder %s21, 1
      %p254 = scmp.ne.s32.totalorder %s249, %s251
      %p255 = scmp.eq.s32.totalorder %s21, 0
      %p256 = por %p254, %p255
      %p257 = scmp.ne.s32.totalorder %s249, %s251
      %p258 = scmp.eq.s32.totalorder %s26, 1
      %p259 = por %p257, %p258
      %p260 = scmp.ne.s32.totalorder %s251, %s252
      %p261 = scmp.eq.s32.totalorder %s26, 0
      %p262 = por %p260, %p261
      %p263 = scmp.ne.s32.totalorder %s251, %s252
      %p264 = scmp.eq.s32.totalorder %s27, 1
      %p265 = por %p263, %p264
      %p267 = scmp.ne.s32.totalorder %s252, %s266
      %p268 = scmp.eq.s32.totalorder %s27, 0
      %p269 = por %p267, %p268
      %s270 = ssub.s32 %s21, %s28
      %p271 = scmp.eq.s32.totalorder %s270, 0
      %s273 = sadd.s32 %s272, 1
      %s274 = scalar_select %p271, %s272, %s273
      %p277 = pneg %p271
      %p278 = scmp.eq.s32.totalorder %s21, 1
      %p279 = por %p277, %p278
      %p280 = scmp.ne.s32.totalorder %s272, %s275
      %p281 = scmp.eq.s32.totalorder %s21, 0
      %p282 = por %p280, %p281
      %p283 = scmp.ne.s32.totalorder %s272, %s275
      %p284 = scmp.eq.s32.totalorder %s26, 1
      %p285 = por %p283, %p284
      %p286 = scmp.ne.s32.totalorder %s275, %s276
      %p287 = scmp.eq.s32.totalorder %s26, 0
      %p288 = por %p286, %p287
      %p289 = scmp.ne.s32.totalorder %s275, %s276
      %p290 = scmp.eq.s32.totalorder %s27, 1
      %p291 = por %p289, %p290
      %p293 = scmp.ne.s32.totalorder %s276, %s292
      %p294 = scmp.eq.s32.totalorder %s27, 0
      %p295 = por %p293, %p294
      %p296 = scmp.le.s32.totalorder 1, %s21
      %p297 = scmp.lt.s32.totalorder %s21, 3
      %p298 = pnand %p296, %p297
      %p299 = pneg %p298
      // Predicated region
      $region9: #{tpu_custom_call.1} parent=5 // pred_check
        _
      $region10: #{tpu_custom_call.1} parent=5 // pred_check_branch
        %301 = sbr.rel (%p298) target = $region12
      $region11: #{tpu_custom_call.1} parent=5 // pred_region
        %s302 = ssub.s32 %s21, 1
        // Predicated region
        $region13: #{tpu_custom_call.1} parent=11 // pred_check
          %p303 = pneg %p94
        $region14: #{tpu_custom_call.1} parent=11 // pred_check_branch
          %305 = sbr.rel (%p303) target = $region16
        $region15: #{tpu_custom_call.1} parent=11 // pred_region
          _
        $region16: #{tpu_custom_call.1} parent=11 // pred_fallthru
          _
        // Predicated region
        $region17: #{tpu_custom_call.1} parent=11 // pred_check
          %p306 = pneg %p115
        $region18: #{tpu_custom_call.1} parent=11 // pred_check_branch
          %308 = sbr.rel (%p306) target = $region20
        $region19: #{tpu_custom_call.1} parent=11 // pred_region
          _
        $region20: #{tpu_custom_call.1} parent=11 // pred_fallthru
          _
        // Predicated region
        $region21: #{tpu_custom_call.1} parent=11 // pred_check
          %p309 = pneg %p136
        $region22: #{tpu_custom_call.1} parent=11 // pred_check_branch
          %311 = sbr.rel (%p309) target = $region24
        $region23: #{tpu_custom_call.1} parent=11 // pred_region
          _
        $region24: #{tpu_custom_call.1} parent=11 // pred_fallthru
          _
        // Predicated region
        $region25: #{tpu_custom_call.1} parent=11 // pred_check
          %p312 = pneg %p157
        $region26: #{tpu_custom_call.1} parent=11 // pred_check_branch
          %314 = sbr.rel (%p312) target = $region28
        $region27: #{tpu_custom_call.1} parent=11 // pred_region
          _
        $region28: #{tpu_custom_call.1} parent=11 // pred_fallthru
          _
        // Predicated region
        $region29: #{tpu_custom_call.1} parent=11 // pred_check
          %p315 = pneg %p178
        $region30: #{tpu_custom_call.1} parent=11 // pred_check_branch
          %317 = sbr.rel (%p315) target = $region32
        $region31: #{tpu_custom_call.1} parent=11 // pred_region
          _
        $region32: #{tpu_custom_call.1} parent=11 // pred_fallthru
          _
        // Predicated region
        $region33: #{tpu_custom_call.1} parent=11 // pred_check
          %p318 = pneg %p199
        $region34: #{tpu_custom_call.1} parent=11 // pred_check_branch
          %320 = sbr.rel (%p318) target = $region36
        $region35: #{tpu_custom_call.1} parent=11 // pred_region
          _
        $region36: #{tpu_custom_call.1} parent=11 // pred_fallthru
          _
        // Predicated region
        $region37: #{tpu_custom_call.1} parent=11 // pred_check
          %p321 = pneg %p220
        $region38: #{tpu_custom_call.1} parent=11 // pred_check_branch
          %323 = sbr.rel (%p321) target = $region40
        $region39: #{tpu_custom_call.1} parent=11 // pred_region
          _
        $region40: #{tpu_custom_call.1} parent=11 // pred_fallthru
          _
        // Predicated region
        $region41: #{tpu_custom_call.1} parent=11 // pred_check
          %p324 = pneg %p241
        $region42: #{tpu_custom_call.1} parent=11 // pred_check_branch
          %326 = sbr.rel (%p324) target = $region44
        $region43: #{tpu_custom_call.1} parent=11 // pred_region
          %328 = vsyncadd [#allocation3], 0
          %s329 = sshll.u32 %s9, 4
          %s330 = int_to_ptr.hbm [resolvable:$true] %s329
          %s331 = sshll.u32 [#allocation2], 4
          %s332 = int_to_ptr.vmem [resolvable:$true] %s331
          %337 = dma.hbm_to_vmem [thread:$0]  %s330, 2048, %s332, [#allocation3], 128, 128, 8
        $region44: #{tpu_custom_call.1} parent=11 // pred_fallthru
          _
        // Predicated region
        $region45: #{tpu_custom_call.1} parent=11 // pred_check
          %p338 = pneg %p262
        $region46: #{tpu_custom_call.1} parent=11 // pred_check_branch
          %340 = sbr.rel (%p338) target = $region48
        $region47: #{tpu_custom_call.1} parent=11 // pred_region
          _
        $region48: #{tpu_custom_call.1} parent=11 // pred_fallthru
          _
      $region12: #{tpu_custom_call.1} parent=5 // pred_fallthru
        _
      %p341 = scmp.lt.s32.totalorder %s21, 2
      // Predicated region
      $region49: #{tpu_custom_call.1} parent=5 // pred_check
        %p342 = pneg %p341
      $region50: #{tpu_custom_call.1} parent=5 // pred_check_branch
        %344 = sbr.rel (%p342) target = $region52
      $region51: #{tpu_custom_call.1} parent=5 // pred_region
        // Predicated region
        $region53: #{tpu_custom_call.1} parent=51 // pred_check
          %p345 = pneg %p41
        $region54: #{tpu_custom_call.1} parent=51 // pred_check_branch
          %347 = sbr.rel (%p345) target = $region56
        $region55: #{tpu_custom_call.1} parent=51 // pred_region
          %s348 = smul.u32 16, %s21
          %p349 = scmp.lt.s32.totalorder %s348, 31
          %s350 = scalar_select %p349, %s348, 31
          %s351 = smul.addr %s350, 8
          %s352 = scalar_lea.vmem %s0, %s351
          %s353 = smul.u32 16, %s21
        $region56: #{tpu_custom_call.1} parent=51 // pred_fallthru
          _
        // Predicated region
        $region57: #{tpu_custom_call.1} parent=51 // pred_check
          %p354 = pneg %p67
        $region58: #{tpu_custom_call.1} parent=51 // pred_check_branch
          %356 = sbr.rel (%p354) target = $region60
        $region59: #{tpu_custom_call.1} parent=51 // pred_region
          %s357 = smul.u32 16, %s21
          %p358 = scmp.lt.s32.totalorder %s357, 31
          %s359 = scalar_select %p358, %s357, 31
          %s360 = smul.addr %s359, 8
          %s361 = scalar_lea.vmem %s1, %s360
          %s362 = smul.u32 16, %s21
        $region60: #{tpu_custom_call.1} parent=51 // pred_fallthru
          _
      $region52: #{tpu_custom_call.1} parent=5 // pred_fallthru
        _
      %p363 = scmp.le.s32.totalorder 1, %s21
      %p364 = scmp.lt.s32.totalorder %s21, 3
      %p365 = pnand %p363, %p364
      %p366 = pneg %p365
      // Predicated region
      $region61: #{tpu_custom_call.1} parent=5 // pred_check
        _
      $region62: #{tpu_custom_call.1} parent=5 // pred_check_branch
        %368 = sbr.rel (%p365) target = $region64
      $region63: #{tpu_custom_call.1} parent=5 // pred_region
        %s369 = ssub.s32 %s21, 1
        // Predicated region
        $region65: #{tpu_custom_call.1} parent=63 // pred_check
          %p370 = pneg %p241
        $region66: #{tpu_custom_call.1} parent=63 // pred_check_branch
          %372 = sbr.rel (%p370) target = $region68
        $region67: #{tpu_custom_call.1} parent=63 // pred_region
          %374 = dma.done [#allocation3], 2048
        $region68: #{tpu_custom_call.1} parent=63 // pred_fallthru
          _
        %s375 = smul.u32 16, %s26
        %p376 = scmp.lt.s32.totalorder %s375, 31
        %s377 = scalar_select %p376, %s375, 31
        %s378 = smul.addr %s377, 8
        %s379 = scalar_lea.vmem %s0, %s378
        %p380 = pneg %p47
        %p381 = pneg %p44
        %s382 = smul.u32 16, %s26
        %p383 = scmp.lt.s32.totalorder %s382, 31
        %s384 = scalar_select %p383, %s382, 31
        %s385 = smul.addr %s384, 8
        %s386 = scalar_lea.vmem %s1, %s385
        %p387 = pneg %p73
        %p388 = pneg %p70
        %p389 = pneg %p94
        %p390 = pneg %p91
        %p391 = pneg %p115
        %p392 = pneg %p112
        %p393 = pneg %p136
        %p394 = pneg %p133
        %p395 = pneg %p157
        %p396 = pneg %p154
        %p397 = pneg %p178
        %p398 = pneg %p175
        %p399 = pneg %p199
        %p400 = pneg %p196
        %p401 = pneg %p220
        %p402 = pneg %p217
        %p403 = pneg %p241
        %p404 = pneg %p238
        %p405 = pneg %p262
        %p406 = pneg %p259
        %p407 = pneg %p288
        %p408 = pneg %p285
        %s409 = sand.u32 %s275, 1
        %s410 = scalar_lea.sflag [#allocation4], %s409
        %s411 = sand.u32 %s275, 1
        %s412 = smul.addr %s411, 128
        %s413 = scalar_lea.vmem [#allocation5], %s412
        %s414 = smul.u32 16, %s26
        %p415 = scmp.lt.s32.totalorder %s414, 31
        %s416 = scalar_select %p415, %s414, 31
        %s417 = smul.addr %s416, 8
        %s418 = scalar_lea.vmem %s0, %s417
        %s419 = smul.u32 16, %s26
        %s420 = smul.u32 16, %s26
        %p421 = scmp.lt.s32.totalorder %s420, 31
        %s422 = scalar_select %p421, %s420, 31
        %s423 = smul.addr %s422, 8
        %s424 = scalar_lea.vmem %s1, %s423
        %s425 = smul.u32 16, %s26
        %s426 = smul.u32 16, %s26
        %v427 = vld [vmem:[%s418] sm:$0xff]
        %v428 = vld [vmem:[%s418 + $0x8] sm:$0xff]
        %v429 = vld [vmem:[%s418 + $0x10] sm:$0xff]
        %v430 = vld [vmem:[%s418 + $0x18] sm:$0xff]
        %v431 = vld [vmem:[%s418 + $0x20] sm:$0xff]
        %v432 = vld [vmem:[%s418 + $0x28] sm:$0xff]
        %v433 = vld [vmem:[%s418 + $0x30] sm:$0xff]
        %v434 = vld [vmem:[%s418 + $0x38] sm:$0xff]
        %v435 = vld [vmem:[%s418 + $0x40] sm:$0xff]
        %v436 = vld [vmem:[%s418 + $0x48] sm:$0xff]
        %v437 = vld [vmem:[%s418 + $0x50] sm:$0xff]
        %v438 = vld [vmem:[%s418 + $0x58] sm:$0xff]
        %v439 = vld [vmem:[%s418 + $0x60] sm:$0xff]
        %v440 = vld [vmem:[%s418 + $0x68] sm:$0xff]
        %v441 = vld [vmem:[%s418 + $0x70] sm:$0xff]
        %v442 = vld [vmem:[%s418 + $0x78] sm:$0xff]
        %v443 = vld [vmem:[%s424] sm:$0xff]
        %v444 = vld [vmem:[%s424 + $0x8] sm:$0xff]
        %v445 = vld [vmem:[%s424 + $0x10] sm:$0xff]
        %v446 = vld [vmem:[%s424 + $0x18] sm:$0xff]
        %v447 = vld [vmem:[%s424 + $0x20] sm:$0xff]
        %v448 = vld [vmem:[%s424 + $0x28] sm:$0xff]
        %v449 = vld [vmem:[%s424 + $0x30] sm:$0xff]
        %v450 = vld [vmem:[%s424 + $0x38] sm:$0xff]
        %v451 = vld [vmem:[%s424 + $0x40] sm:$0xff]
        %v452 = vld [vmem:[%s424 + $0x48] sm:$0xff]
        %v453 = vld [vmem:[%s424 + $0x50] sm:$0xff]
        %v454 = vld [vmem:[%s424 + $0x58] sm:$0xff]
        %v455 = vld [vmem:[%s424 + $0x60] sm:$0xff]
        %v456 = vld [vmem:[%s424 + $0x68] sm:$0xff]
        %v457 = vld [vmem:[%s424 + $0x70] sm:$0xff]
        %v458 = vld [vmem:[%s424 + $0x78] sm:$0xff]
        %v459 = vmul.f32 %v427, %v427
        %v460 = vmul.f32 %v428, %v428
        %v461 = vmul.f32 %v429, %v429
        %v462 = vmul.f32 %v430, %v430
        %v463 = vmul.f32 %v431, %v431
        %v464 = vmul.f32 %v432, %v432
        %v465 = vmul.f32 %v433, %v433
        %v466 = vmul.f32 %v434, %v434
        %v467 = vmul.f32 %v435, %v435
        %v468 = vmul.f32 %v436, %v436
        %v469 = vmul.f32 %v437, %v437
        %v470 = vmul.f32 %v438, %v438
        %v471 = vmul.f32 %v439, %v439
        %v472 = vmul.f32 %v440, %v440
        %v473 = vmul.f32 %v441, %v441
        %v474 = vmul.f32 %v442, %v442
        %475 = vadd.xlane.f32.xlu0 %v459
        %v476 = vpop.xlane.xlu0 %475
        %477 = vadd.xlane.f32.xlu0 %v460
        %v478 = vpop.xlane.xlu0 %477
        %479 = vadd.xlane.f32.xlu0 %v461
        %v480 = vpop.xlane.xlu0 %479
        %481 = vadd.xlane.f32.xlu0 %v462
        %v482 = vpop.xlane.xlu0 %481
        %483 = vadd.xlane.f32.xlu0 %v463
        %v484 = vpop.xlane.xlu0 %483
        %485 = vadd.xlane.f32.xlu0 %v464
        %v486 = vpop.xlane.xlu0 %485
        %487 = vadd.xlane.f32.xlu0 %v465
        %v488 = vpop.xlane.xlu0 %487
        %489 = vadd.xlane.f32.xlu0 %v466
        %v490 = vpop.xlane.xlu0 %489
        %491 = vadd.xlane.f32.xlu0 %v467
        %v492 = vpop.xlane.xlu0 %491
        %493 = vadd.xlane.f32.xlu0 %v468
        %v494 = vpop.xlane.xlu0 %493
        %495 = vadd.xlane.f32.xlu0 %v469
        %v496 = vpop.xlane.xlu0 %495
        %497 = vadd.xlane.f32.xlu0 %v470
        %v498 = vpop.xlane.xlu0 %497
        %499 = vadd.xlane.f32.xlu0 %v471
        %v500 = vpop.xlane.xlu0 %499
        %501 = vadd.xlane.f32.xlu0 %v472
        %v502 = vpop.xlane.xlu0 %501
        %503 = vadd.xlane.f32.xlu0 %v473
        %v504 = vpop.xlane.xlu0 %503
        %505 = vadd.xlane.f32.xlu0 %v474
        %v506 = vpop.xlane.xlu0 %505
        %v507 = vld [vmem:[%s2] sm:$0xff]
        %v508 = vld [vmem:[%s2 + $0x8] sm:$0xff]
        %v509 = vld [vmem:[%s2 + $0x10] sm:$0xff]
        %v510 = vld [vmem:[%s2 + $0x18] sm:$0xff]
        %v511 = vld [vmem:[%s2 + $0x20] sm:$0xff]
        %v512 = vld [vmem:[%s2 + $0x28] sm:$0xff]
        %v513 = vld [vmem:[%s2 + $0x30] sm:$0xff]
        %v514 = vld [vmem:[%s2 + $0x38] sm:$0xff]
        %v515 = vld [vmem:[%s2 + $0x40] sm:$0xff]
        %v516 = vld [vmem:[%s2 + $0x48] sm:$0xff]
        %v517 = vld [vmem:[%s2 + $0x50] sm:$0xff]
        %v518 = vld [vmem:[%s2 + $0x58] sm:$0xff]
        %v519 = vld [vmem:[%s2 + $0x60] sm:$0xff]
        %v520 = vld [vmem:[%s2 + $0x68] sm:$0xff]
        %v521 = vld [vmem:[%s2 + $0x70] sm:$0xff]
        %v522 = vld [vmem:[%s2 + $0x78] sm:$0xff]
        %523 = vmatpush.msra.mxu0 %v522
        %524 = vmatpush.msra.mxu0 %v521
        %525 = vmatpush.msra.mxu0 %v520
        %526 = vmatpush.msra.mxu0 %v519
        %527 = vmatpush.msra.mxu0 %v518
        %528 = vmatpush.msra.mxu0 %v517
        %529 = vmatpush.msra.mxu0 %v516
        %530 = vmatpush.msra.mxu0 %v515
        %531 = vmatpush.msra.mxu0 %v514
        %532 = vmatpush.msra.mxu0 %v513
        %533 = vmatpush.msra.mxu0 %v512
        %534 = vmatpush.msra.mxu0 %v511
        %535 = vmatpush.msra.mxu0 %v510
        %536 = vmatpush.msra.mxu0 %v509
        %537 = vmatpush.msra.mxu0 %v508
        %538 = vmatpush.msra.mxu0 %v507
        %539 = vmatmul.f32.gmra.mxu0 %v427
        %v540 = vpop.f32.mrf.mxu0
        %v541 = vadd.f32 0.0, %v540
        %542 = vmatmul.f32.gmra.mxu0 %v428
        %v543 = vpop.f32.mrf.mxu0
        %v544 = vadd.f32 0.0, %v543
        %545 = vmatmul.f32.gmra.mxu0 %v429
        %v546 = vpop.f32.mrf.mxu0
        %v547 = vadd.f32 0.0, %v546
        %548 = vmatmul.f32.gmra.mxu0 %v430
        %v549 = vpop.f32.mrf.mxu0
        %v550 = vadd.f32 0.0, %v549
        %551 = vmatmul.f32.gmra.mxu0 %v431
        %v552 = vpop.f32.mrf.mxu0
        %v553 = vadd.f32 0.0, %v552
        %554 = vmatmul.f32.gmra.mxu0 %v432
        %v555 = vpop.f32.mrf.mxu0
        %v556 = vadd.f32 0.0, %v555
        %557 = vmatmul.f32.gmra.mxu0 %v433
        %v558 = vpop.f32.mrf.mxu0
        %v559 = vadd.f32 0.0, %v558
        %560 = vmatmul.f32.gmra.mxu0 %v434
        %v561 = vpop.f32.mrf.mxu0
        %v562 = vadd.f32 0.0, %v561
        %563 = vmatmul.f32.gmra.mxu0 %v435
        %v564 = vpop.f32.mrf.mxu0
        %v565 = vadd.f32 0.0, %v564
        %566 = vmatmul.f32.gmra.mxu0 %v436
        %v567 = vpop.f32.mrf.mxu0
        %v568 = vadd.f32 0.0, %v567
        %569 = vmatmul.f32.gmra.mxu0 %v437
        %v570 = vpop.f32.mrf.mxu0
        %v571 = vadd.f32 0.0, %v570
        %572 = vmatmul.f32.gmra.mxu0 %v438
        %v573 = vpop.f32.mrf.mxu0
        %v574 = vadd.f32 0.0, %v573
        %575 = vmatmul.f32.gmra.mxu0 %v439
        %v576 = vpop.f32.mrf.mxu0
        %v577 = vadd.f32 0.0, %v576
        %578 = vmatmul.f32.gmra.mxu0 %v440
        %v579 = vpop.f32.mrf.mxu0
        %v580 = vadd.f32 0.0, %v579
        %581 = vmatmul.f32.gmra.mxu0 %v441
        %v582 = vpop.f32.mrf.mxu0
        %v583 = vadd.f32 0.0, %v582
        %584 = vmatmul.f32.gmra.mxu0 %v442
        %v585 = vpop.f32.mrf.mxu0
        %v586 = vadd.f32 0.0, %v585
        %587 = vdwg.mxu0
        %v588 = vmul.f32 %v541, %v541
        %v589 = vmul.f32 %v544, %v544
        %v590 = vmul.f32 %v547, %v547
        %v591 = vmul.f32 %v550, %v550
        %v592 = vmul.f32 %v553, %v553
        %v593 = vmul.f32 %v556, %v556
        %v594 = vmul.f32 %v559, %v559
        %v595 = vmul.f32 %v562, %v562
        %v596 = vmul.f32 %v565, %v565
        %v597 = vmul.f32 %v568, %v568
        %v598 = vmul.f32 %v571, %v571
        %v599 = vmul.f32 %v574, %v574
        %v600 = vmul.f32 %v577, %v577
        %v601 = vmul.f32 %v580, %v580
        %v602 = vmul.f32 %v583, %v583
        %v603 = vmul.f32 %v586, %v586
        %vm604 = vcmask 130048
        %v605 = vsel %vm604, %v588, 0.0
        %606 = vadd.xlane.f32.xlu0 %v605
        %v607 = vpop.xlane.xlu0 %606
        %v608 = vsel %vm604, %v589, 0.0
        %609 = vadd.xlane.f32.xlu0 %v608
        %v610 = vpop.xlane.xlu0 %609
        %v611 = vsel %vm604, %v590, 0.0
        %612 = vadd.xlane.f32.xlu0 %v611
        %v613 = vpop.xlane.xlu0 %612
        %v614 = vsel %vm604, %v591, 0.0
        %615 = vadd.xlane.f32.xlu0 %v614
        %v616 = vpop.xlane.xlu0 %615
        %v617 = vsel %vm604, %v592, 0.0
        %618 = vadd.xlane.f32.xlu0 %v617
        %v619 = vpop.xlane.xlu0 %618
        %v620 = vsel %vm604, %v593, 0.0
        %621 = vadd.xlane.f32.xlu0 %v620
        %v622 = vpop.xlane.xlu0 %621
        %v623 = vsel %vm604, %v594, 0.0
        %624 = vadd.xlane.f32.xlu0 %v623
        %v625 = vpop.xlane.xlu0 %624
        %v626 = vsel %vm604, %v595, 0.0
        %627 = vadd.xlane.f32.xlu0 %v626
        %v628 = vpop.xlane.xlu0 %627
        %v629 = vsel %vm604, %v596, 0.0
        %630 = vadd.xlane.f32.xlu0 %v629
        %v631 = vpop.xlane.xlu0 %630
        %v632 = vsel %vm604, %v597, 0.0
        %633 = vadd.xlane.f32.xlu0 %v632
        %v634 = vpop.xlane.xlu0 %633
        %v635 = vsel %vm604, %v598, 0.0
        %636 = vadd.xlane.f32.xlu0 %v635
        %v637 = vpop.xlane.xlu0 %636
        %v638 = vsel %vm604, %v599, 0.0
        %639 = vadd.xlane.f32.xlu0 %v638
        %v640 = vpop.xlane.xlu0 %639
        %v641 = vsel %vm604, %v600, 0.0
        %642 = vadd.xlane.f32.xlu0 %v641
        %v643 = vpop.xlane.xlu0 %642
        %v644 = vsel %vm604, %v601, 0.0
        %645 = vadd.xlane.f32.xlu0 %v644
        %v646 = vpop.xlane.xlu0 %645
        %v647 = vsel %vm604, %v602, 0.0
        %648 = vadd.xlane.f32.xlu0 %v647
        %v649 = vpop.xlane.xlu0 %648
        %v650 = vsel %vm604, %v603, 0.0
        %651 = vadd.xlane.f32.xlu0 %v650
        %v652 = vpop.xlane.xlu0 %651
        %v653 = vsub.f32 %v607, %v476
        %v654 = vsub.f32 %v610, %v478
        %v655 = vsub.f32 %v613, %v480
        %v656 = vsub.f32 %v616, %v482
        %v657 = vsub.f32 %v619, %v484
        %v658 = vsub.f32 %v622, %v486
        %v659 = vsub.f32 %v625, %v488
        %v660 = vsub.f32 %v628, %v490
        %v661 = vsub.f32 %v631, %v492
        %v662 = vsub.f32 %v634, %v494
        %v663 = vsub.f32 %v637, %v496
        %v664 = vsub.f32 %v640, %v498
        %v665 = vsub.f32 %v643, %v500
        %v666 = vsub.f32 %v646, %v502
        %v667 = vsub.f32 %v649, %v504
        %v668 = vsub.f32 %v652, %v506
        %v669 = vmul.f32 %v653, 0.5
        %v670 = vmul.f32 %v654, 0.5
        %v671 = vmul.f32 %v655, 0.5
        %v672 = vmul.f32 %v656, 0.5
        %v673 = vmul.f32 %v657, 0.5
        %v674 = vmul.f32 %v658, 0.5
        %v675 = vmul.f32 %v659, 0.5
        %v676 = vmul.f32 %v660, 0.5
        %v677 = vmul.f32 %v661, 0.5
        %v678 = vmul.f32 %v662, 0.5
        %v679 = vmul.f32 %v663, 0.5
        %v680 = vmul.f32 %v664, 0.5
        %v681 = vmul.f32 %v665, 0.5
        %v682 = vmul.f32 %v666, 0.5
        %v683 = vmul.f32 %v667, 0.5
        %v684 = vmul.f32 %v668, 0.5
        %v685 = vadd.f32 %v443, %v669
        %v686 = vadd.f32 %v444, %v670
        %v687 = vadd.f32 %v445, %v671
        %v688 = vadd.f32 %v446, %v672
        %v689 = vadd.f32 %v447, %v673
        %v690 = vadd.f32 %v448, %v674
        %v691 = vadd.f32 %v449, %v675
        %v692 = vadd.f32 %v450, %v676
        %v693 = vadd.f32 %v451, %v677
        %v694 = vadd.f32 %v452, %v678
        %v695 = vadd.f32 %v453, %v679
        %v696 = vadd.f32 %v454, %v680
        %v697 = vadd.f32 %v455, %v681
        %v698 = vadd.f32 %v456, %v682
        %v699 = vadd.f32 %v457, %v683
        %v700 = vadd.f32 %v458, %v684
        %v701 = vld [vmem:[%s3] sm:$0x1]
        %v703 = vperm.slane %v701, 0
        %v705 = vmul.f32 %v427, %v703
        %v706 = vmul.f32 %v428, %v703
        %v707 = vmul.f32 %v429, %v703
        %v708 = vmul.f32 %v430, %v703
        %v709 = vmul.f32 %v431, %v703
        %v710 = vmul.f32 %v432, %v703
        %v711 = vmul.f32 %v433, %v703
        %v712 = vmul.f32 %v434, %v703
        %v713 = vmul.f32 %v435, %v703
        %v714 = vmul.f32 %v436, %v703
        %v715 = vmul.f32 %v437, %v703
        %v716 = vmul.f32 %v438, %v703
        %v717 = vmul.f32 %v439, %v703
        %v718 = vmul.f32 %v440, %v703
        %v719 = vmul.f32 %v441, %v703
        %v720 = vmul.f32 %v442, %v703
        %v721 = vld [vmem:[%s4] sm:$0x1]
        %v723 = vperm.slane %v721, 0
        %v725 = vadd.f32 %v705, %v723
        %v726 = vadd.f32 %v706, %v723
        %v727 = vadd.f32 %v707, %v723
        %v728 = vadd.f32 %v708, %v723
        %v729 = vadd.f32 %v709, %v723
        %v730 = vadd.f32 %v710, %v723
        %v731 = vadd.f32 %v711, %v723
        %v732 = vadd.f32 %v712, %v723
        %v733 = vadd.f32 %v713, %v723
        %v734 = vadd.f32 %v714, %v723
        %v735 = vadd.f32 %v715, %v723
        %v736 = vadd.f32 %v716, %v723
        %v737 = vadd.f32 %v717, %v723
        %v738 = vadd.f32 %v718, %v723
        %v739 = vadd.f32 %v719, %v723
        %v740 = vadd.f32 %v720, %v723
        %v741 = vld [vmem:[%s5] sm:$0xff]
        %v742 = vld [vmem:[%s5 + $0x8] sm:$0xff]
        %v743 = vld [vmem:[%s5 + $0x10] sm:$0xff]
        %v744 = vld [vmem:[%s5 + $0x18] sm:$0xff]
        %v745 = vld [vmem:[%s5 + $0x20] sm:$0xff]
        %v746 = vld [vmem:[%s5 + $0x28] sm:$0xff]
        %v747 = vld [vmem:[%s5 + $0x30] sm:$0xff]
        %v748 = vld [vmem:[%s5 + $0x38] sm:$0xff]
        %v749 = vld [vmem:[%s5 + $0x40] sm:$0xff]
        %v750 = vld [vmem:[%s5 + $0x48] sm:$0xff]
        %v751 = vld [vmem:[%s5 + $0x50] sm:$0xff]
        %v752 = vld [vmem:[%s5 + $0x58] sm:$0xff]
        %v753 = vld [vmem:[%s5 + $0x60] sm:$0xff]
        %v754 = vld [vmem:[%s5 + $0x68] sm:$0xff]
        %v755 = vld [vmem:[%s5 + $0x70] sm:$0xff]
        %v756 = vld [vmem:[%s5 + $0x78] sm:$0xff]
        %v757 = vld [vmem:[%s6] sm:$0x1]
        %v759 = vperm.slane %v757, 0
        %761 = vmatpush.msra.mxu0 %v756
        %762 = vmatpush.msra.mxu0 %v755
        %763 = vmatpush.msra.mxu0 %v754
        %764 = vmatpush.msra.mxu0 %v753
        %765 = vmatpush.msra.mxu0 %v752
        %766 = vmatpush.msra.mxu0 %v751
        %767 = vmatpush.msra.mxu0 %v750
        %768 = vmatpush.msra.mxu0 %v749
        %769 = vmatpush.msra.mxu0 %v748
        %770 = vmatpush.msra.mxu0 %v747
        %771 = vmatpush.msra.mxu0 %v746
        %772 = vmatpush.msra.mxu0 %v745
        %773 = vmatpush.msra.mxu0 %v744
        %774 = vmatpush.msra.mxu0 %v743
        %775 = vmatpush.msra.mxu0 %v742
        %776 = vmatpush.msra.mxu0 %v741
        %777 = vmatmul.f32.gmra.mxu0 %v725
        %v778 = vpop.f32.mrf.mxu0
        %v779 = vadd.f32 %v759, %v778
        %780 = vmatmul.f32.gmra.mxu0 %v726
        %v781 = vpop.f32.mrf.mxu0
        %v782 = vadd.f32 %v759, %v781
        %783 = vmatmul.f32.gmra.mxu0 %v727
        %v784 = vpop.f32.mrf.mxu0
        %v785 = vadd.f32 %v759, %v784
        %786 = vmatmul.f32.gmra.mxu0 %v728
        %v787 = vpop.f32.mrf.mxu0
        %v788 = vadd.f32 %v759, %v787
        %789 = vmatmul.f32.gmra.mxu0 %v729
        %v790 = vpop.f32.mrf.mxu0
        %v791 = vadd.f32 %v759, %v790
        %792 = vmatmul.f32.gmra.mxu0 %v730
        %v793 = vpop.f32.mrf.mxu0
        %v794 = vadd.f32 %v759, %v793
        %795 = vmatmul.f32.gmra.mxu0 %v731
        %v796 = vpop.f32.mrf.mxu0
        %v797 = vadd.f32 %v759, %v796
        %798 = vmatmul.f32.gmra.mxu0 %v732
        %v799 = vpop.f32.mrf.mxu0
        %v800 = vadd.f32 %v759, %v799
        %801 = vmatmul.f32.gmra.mxu0 %v733
        %v802 = vpop.f32.mrf.mxu0
        %v803 = vadd.f32 %v759, %v802
        %804 = vmatmul.f32.gmra.mxu0 %v734
        %v805 = vpop.f32.mrf.mxu0
        %v806 = vadd.f32 %v759, %v805
        %807 = vmatmul.f32.gmra.mxu0 %v735
        %v808 = vpop.f32.mrf.mxu0
        %v809 = vadd.f32 %v759, %v808
        %810 = vmatmul.f32.gmra.mxu0 %v736
        %v811 = vpop.f32.mrf.mxu0
        %v812 = vadd.f32 %v759, %v811
        %813 = vmatmul.f32.gmra.mxu0 %v737
        %v814 = vpop.f32.mrf.mxu0
        %v815 = vadd.f32 %v759, %v814
        %816 = vmatmul.f32.gmra.mxu0 %v738
        %v817 = vpop.f32.mrf.mxu0
        %v818 = vadd.f32 %v759, %v817
        %819 = vmatmul.f32.gmra.mxu0 %v739
        %v820 = vpop.f32.mrf.mxu0
        %v821 = vadd.f32 %v759, %v820
        %822 = vmatmul.f32.gmra.mxu0 %v740
        %v823 = vpop.f32.mrf.mxu0
        %v824 = vadd.f32 %v759, %v823
        %825 = vdwg.mxu0
        %vm826 = vcmp.gt.f32.partialorder %v779, 0.0
        %vm827 = vcmp.gt.f32.partialorder %v782, 0.0
        %vm828 = vcmp.gt.f32.partialorder %v785, 0.0
        %vm829 = vcmp.gt.f32.partialorder %v788, 0.0
        %vm830 = vcmp.gt.f32.partialorder %v791, 0.0
        %vm831 = vcmp.gt.f32.partialorder %v794, 0.0
        %vm832 = vcmp.gt.f32.partialorder %v797, 0.0
        %vm833 = vcmp.gt.f32.partialorder %v800, 0.0
        %vm834 = vcmp.gt.f32.partialorder %v803, 0.0
        %vm835 = vcmp.gt.f32.partialorder %v806, 0.0
        %vm836 = vcmp.gt.f32.partialorder %v809, 0.0
        %vm837 = vcmp.gt.f32.partialorder %v812, 0.0
        %vm838 = vcmp.gt.f32.partialorder %v815, 0.0
        %vm839 = vcmp.gt.f32.partialorder %v818, 0.0
        %vm840 = vcmp.gt.f32.partialorder %v821, 0.0
        %vm841 = vcmp.gt.f32.partialorder %v824, 0.0
        %v842 = vmul.f32 %v779, 0.2
        %v843 = vmul.f32 %v782, 0.2
        %v844 = vmul.f32 %v785, 0.2
        %v845 = vmul.f32 %v788, 0.2
        %v846 = vmul.f32 %v791, 0.2
        %v847 = vmul.f32 %v794, 0.2
        %v848 = vmul.f32 %v797, 0.2
        %v849 = vmul.f32 %v800, 0.2
        %v850 = vmul.f32 %v803, 0.2
        %v851 = vmul.f32 %v806, 0.2
        %v852 = vmul.f32 %v809, 0.2
        %v853 = vmul.f32 %v812, 0.2
        %v854 = vmul.f32 %v815, 0.2
        %v855 = vmul.f32 %v818, 0.2
        %v856 = vmul.f32 %v821, 0.2
        %v857 = vmul.f32 %v824, 0.2
        %v858 = vsel %vm826, %v779, %v842
        %v859 = vsel %vm827, %v782, %v843
        %v860 = vsel %vm828, %v785, %v844
        %v861 = vsel %vm829, %v788, %v845
        %v862 = vsel %vm830, %v791, %v846
        %v863 = vsel %vm831, %v794, %v847
        %v864 = vsel %vm832, %v797, %v848
        %v865 = vsel %vm833, %v800, %v849
        %v866 = vsel %vm834, %v803, %v850
        %v867 = vsel %vm835, %v806, %v851
        %v868 = vsel %vm836, %v809, %v852
        %v869 = vsel %vm837, %v812, %v853
        %v870 = vsel %vm838, %v815, %v854
        %v871 = vsel %vm839, %v818, %v855
        %v872 = vsel %vm840, %v821, %v856
        %v873 = vsel %vm841, %v824, %v857
        %v874 = vadd.f32 %v858, %v725
        %v875 = vadd.f32 %v859, %v726
        %v876 = vadd.f32 %v860, %v727
        %v877 = vadd.f32 %v861, %v728
        %v878 = vadd.f32 %v862, %v729
        %v879 = vadd.f32 %v863, %v730
        %v880 = vadd.f32 %v864, %v731
        %v881 = vadd.f32 %v865, %v732
        %v882 = vadd.f32 %v866, %v733
        %v883 = vadd.f32 %v867, %v734
        %v884 = vadd.f32 %v868, %v735
        %v885 = vadd.f32 %v869, %v736
        %v886 = vadd.f32 %v870, %v737
        %v887 = vadd.f32 %v871, %v738
        %v888 = vadd.f32 %v872, %v739
        %v889 = vadd.f32 %v873, %v740
        %v890 = vld [vmem:[%s7] sm:$0x1]
        %v892 = vperm.slane %v890, 0
        %v894 = vmul.f32 %v874, %v892
        %v895 = vmul.f32 %v875, %v892
        %v896 = vmul.f32 %v876, %v892
        %v897 = vmul.f32 %v877, %v892
        %v898 = vmul.f32 %v878, %v892
        %v899 = vmul.f32 %v879, %v892
        %v900 = vmul.f32 %v880, %v892
        %v901 = vmul.f32 %v881, %v892
        %v902 = vmul.f32 %v882, %v892
        %v903 = vmul.f32 %v883, %v892
        %v904 = vmul.f32 %v884, %v892
        %v905 = vmul.f32 %v885, %v892
        %v906 = vmul.f32 %v886, %v892
        %v907 = vmul.f32 %v887, %v892
        %v908 = vmul.f32 %v888, %v892
        %v909 = vmul.f32 %v889, %v892
        %v910 = vld [vmem:[%s8] sm:$0x1]
        %v912 = vperm.slane %v910, 0
        %v914 = vadd.f32 %v894, %v912
        %v915 = vadd.f32 %v895, %v912
        %v916 = vadd.f32 %v896, %v912
        %v917 = vadd.f32 %v897, %v912
        %v918 = vadd.f32 %v898, %v912
        %v919 = vadd.f32 %v899, %v912
        %v920 = vadd.f32 %v900, %v912
        %v921 = vadd.f32 %v901, %v912
        %v922 = vadd.f32 %v902, %v912
        %v923 = vadd.f32 %v903, %v912
        %v924 = vadd.f32 %v904, %v912
        %v925 = vadd.f32 %v905, %v912
        %v926 = vadd.f32 %v906, %v912
        %v927 = vadd.f32 %v907, %v912
        %v928 = vadd.f32 %v908, %v912
        %v929 = vadd.f32 %v909, %v912
        %v930 = vld [vmem:[#allocation2] sm:$0xff]
        %v931 = vld [vmem:[#allocation2 + $0x8] sm:$0xff]
        %v932 = vld [vmem:[#allocation2 + $0x10] sm:$0xff]
        %v933 = vld [vmem:[#allocation2 + $0x18] sm:$0xff]
        %v934 = vld [vmem:[#allocation2 + $0x20] sm:$0xff]
        %v935 = vld [vmem:[#allocation2 + $0x28] sm:$0xff]
        %v936 = vld [vmem:[#allocation2 + $0x30] sm:$0xff]
        %v937 = vld [vmem:[#allocation2 + $0x38] sm:$0xff]
        %v938 = vld [vmem:[#allocation2 + $0x40] sm:$0xff]
        %v939 = vld [vmem:[#allocation2 + $0x48] sm:$0xff]
        %v940 = vld [vmem:[#allocation2 + $0x50] sm:$0xff]
        %v941 = vld [vmem:[#allocation2 + $0x58] sm:$0xff]
        %v942 = vld [vmem:[#allocation2 + $0x60] sm:$0xff]
        %v943 = vld [vmem:[#allocation2 + $0x68] sm:$0xff]
        %v944 = vld [vmem:[#allocation2 + $0x70] sm:$0xff]
        %v945 = vld [vmem:[#allocation2 + $0x78] sm:$0xff]
        %v946 = vld [vmem:[%s10] sm:$0x1]
        %v948 = vperm.slane %v946, 0
        %950 = vmatpush.msra.mxu0 %v945
        %951 = vmatpush.msra.mxu0 %v944
        %952 = vmatpush.msra.mxu0 %v943
        %953 = vmatpush.msra.mxu0 %v942
        %954 = vmatpush.msra.mxu0 %v941
        %955 = vmatpush.msra.mxu0 %v940
        %956 = vmatpush.msra.mxu0 %v939
        %957 = vmatpush.msra.mxu0 %v938
        %958 = vmatpush.msra.mxu0 %v937
        %959 = vmatpush.msra.mxu0 %v936
        %960 = vmatpush.msra.mxu0 %v935
        %961 = vmatpush.msra.mxu0 %v934
        %962 = vmatpush.msra.mxu0 %v933
        %963 = vmatpush.msra.mxu0 %v932
        %964 = vmatpush.msra.mxu0 %v931
        %965 = vmatpush.msra.mxu0 %v930
        %966 = vmatmul.f32.gmra.mxu0 %v914
        %v967 = vpop.f32.mrf.mxu0
        %v968 = vadd.f32 %v948, %v967
        %969 = vmatmul.f32.gmra.mxu0 %v915
        %v970 = vpop.f32.mrf.mxu0
        %v971 = vadd.f32 %v948, %v970
        %972 = vmatmul.f32.gmra.mxu0 %v916
        %v973 = vpop.f32.mrf.mxu0
        %v974 = vadd.f32 %v948, %v973
        %975 = vmatmul.f32.gmra.mxu0 %v917
        %v976 = vpop.f32.mrf.mxu0
        %v977 = vadd.f32 %v948, %v976
        %978 = vmatmul.f32.gmra.mxu0 %v918
        %v979 = vpop.f32.mrf.mxu0
        %v980 = vadd.f32 %v948, %v979
        %981 = vmatmul.f32.gmra.mxu0 %v919
        %v982 = vpop.f32.mrf.mxu0
        %v983 = vadd.f32 %v948, %v982
        %984 = vmatmul.f32.gmra.mxu0 %v920
        %v985 = vpop.f32.mrf.mxu0
        %v986 = vadd.f32 %v948, %v985
        %987 = vmatmul.f32.gmra.mxu0 %v921
        %v988 = vpop.f32.mrf.mxu0
        %v989 = vadd.f32 %v948, %v988
        %990 = vmatmul.f32.gmra.mxu0 %v922
        %v991 = vpop.f32.mrf.mxu0
        %v992 = vadd.f32 %v948, %v991
        %993 = vmatmul.f32.gmra.mxu0 %v923
        %v994 = vpop.f32.mrf.mxu0
        %v995 = vadd.f32 %v948, %v994
        %996 = vmatmul.f32.gmra.mxu0 %v924
        %v997 = vpop.f32.mrf.mxu0
        %v998 = vadd.f32 %v948, %v997
        %999 = vmatmul.f32.gmra.mxu0 %v925
        %v1000 = vpop.f32.mrf.mxu0
        %v1001 = vadd.f32 %v948, %v1000
        %1002 = vmatmul.f32.gmra.mxu0 %v926
        %v1003 = vpop.f32.mrf.mxu0
        %v1004 = vadd.f32 %v948, %v1003
        %1005 = vmatmul.f32.gmra.mxu0 %v927
        %v1006 = vpop.f32.mrf.mxu0
        %v1007 = vadd.f32 %v948, %v1006
        %1008 = vmatmul.f32.gmra.mxu0 %v928
        %v1009 = vpop.f32.mrf.mxu0
        %v1010 = vadd.f32 %v948, %v1009
        %1011 = vmatmul.f32.gmra.mxu0 %v929
        %v1012 = vpop.f32.mrf.mxu0
        %v1013 = vadd.f32 %v948, %v1012
        %1014 = vdwg.mxu0
        %1016 = vset.pattern.permute.xlu0 0
        %1017 = vperm.xlu0 %1016, %v685
        %v1018 = vpop.permute.xlu0 %1017
        %1021 = vset.pattern.permute.xlu0 0
        %1022 = vperm.xlu0 %1021, %v686
        %v1023 = vpop.permute.xlu0 %1022
        %1026 = vset.pattern.permute.xlu0 0
        %1027 = vperm.xlu0 %1026, %v687
        %v1028 = vpop.permute.xlu0 %1027
        %1031 = vset.pattern.permute.xlu0 0
        %1032 = vperm.xlu0 %1031, %v688
        %v1033 = vpop.permute.xlu0 %1032
        %1036 = vset.pattern.permute.xlu0 0
        %1037 = vperm.xlu0 %1036, %v689
        %v1038 = vpop.permute.xlu0 %1037
        %1041 = vset.pattern.permute.xlu0 0
        %1042 = vperm.xlu0 %1041, %v690
        %v1043 = vpop.permute.xlu0 %1042
        %1046 = vset.pattern.permute.xlu0 0
        %1047 = vperm.xlu0 %1046, %v691
        %v1048 = vpop.permute.xlu0 %1047
        %1051 = vset.pattern.permute.xlu0 0
        %1052 = vperm.xlu0 %1051, %v692
        %v1053 = vpop.permute.xlu0 %1052
        %1056 = vset.pattern.permute.xlu0 0
        %1057 = vperm.xlu0 %1056, %v693
        %v1058 = vpop.permute.xlu0 %1057
        %1061 = vset.pattern.permute.xlu0 0
        %1062 = vperm.xlu0 %1061, %v694
        %v1063 = vpop.permute.xlu0 %1062
        %1066 = vset.pattern.permute.xlu0 0
        %1067 = vperm.xlu0 %1066, %v695
        %v1068 = vpop.permute.xlu0 %1067
        %1071 = vset.pattern.permute.xlu0 0
        %1072 = vperm.xlu0 %1071, %v696
        %v1073 = vpop.permute.xlu0 %1072
        %1076 = vset.pattern.permute.xlu0 0
        %1077 = vperm.xlu0 %1076, %v697
        %v1078 = vpop.permute.xlu0 %1077
        %1081 = vset.pattern.permute.xlu0 0
        %1082 = vperm.xlu0 %1081, %v698
        %v1083 = vpop.permute.xlu0 %1082
        %1086 = vset.pattern.permute.xlu0 0
        %1087 = vperm.xlu0 %1086, %v699
        %v1088 = vpop.permute.xlu0 %1087
        %1091 = vset.pattern.permute.xlu0 0
        %1092 = vperm.xlu0 %1091, %v700
        %v1093 = vpop.permute.xlu0 %1092
        %v1095 = vadd.f32 %v968, %v1018
        %v1096 = vadd.f32 %v971, %v1023
        %v1097 = vadd.f32 %v974, %v1028
        %v1098 = vadd.f32 %v977, %v1033
        %v1099 = vadd.f32 %v980, %v1038
        %v1100 = vadd.f32 %v983, %v1043
        %v1101 = vadd.f32 %v986, %v1048
        %v1102 = vadd.f32 %v989, %v1053
        %v1103 = vadd.f32 %v992, %v1058
        %v1104 = vadd.f32 %v995, %v1063
        %v1105 = vadd.f32 %v998, %v1068
        %v1106 = vadd.f32 %v1001, %v1073
        %v1107 = vadd.f32 %v1004, %v1078
        %v1108 = vadd.f32 %v1007, %v1083
        %v1109 = vadd.f32 %v1010, %v1088
        %v1110 = vadd.f32 %v1013, %v1093
        %1111 = vst [vmem:[%s413] sm:$0xff] %v1095
        %1112 = vst [vmem:[%s413 + $0x8] sm:$0xff] %v1096
        %1113 = vst [vmem:[%s413 + $0x10] sm:$0xff] %v1097
        %1114 = vst [vmem:[%s413 + $0x18] sm:$0xff] %v1098
        %1115 = vst [vmem:[%s413 + $0x20] sm:$0xff] %v1099
        %1116 = vst [vmem:[%s413 + $0x28] sm:$0xff] %v1100
        %1117 = vst [vmem:[%s413 + $0x30] sm:$0xff] %v1101
        %1118 = vst [vmem:[%s413 + $0x38] sm:$0xff] %v1102
        %1119 = vst [vmem:[%s413 + $0x40] sm:$0xff] %v1103
        %1120 = vst [vmem:[%s413 + $0x48] sm:$0xff] %v1104
        %1121 = vst [vmem:[%s413 + $0x50] sm:$0xff] %v1105
        %1122 = vst [vmem:[%s413 + $0x58] sm:$0xff] %v1106
        %1123 = vst [vmem:[%s413 + $0x60] sm:$0xff] %v1107
        %1124 = vst [vmem:[%s413 + $0x68] sm:$0xff] %v1108
        %1125 = vst [vmem:[%s413 + $0x70] sm:$0xff] %v1109
        %1126 = vst [vmem:[%s413 + $0x78] sm:$0xff] %v1110
        %s1127 = sand.u32 %s275, 1
        %s1128 = scalar_lea.sflag [#allocation4], %s1127
        %s1129 = sand.u32 %s275, 1
        %s1130 = smul.addr %s1129, 128
        %s1131 = scalar_lea.vmem [#allocation5], %s1130
        // Predicated region
        $region69: #{tpu_custom_call.1} parent=63 // pred_check
          %p1132 = pneg %p285
        $region70: #{tpu_custom_call.1} parent=63 // pred_check_branch
          %1134 = sbr.rel (%p1132) target = $region72
        $region71: #{tpu_custom_call.1} parent=63 // pred_region
          %s1135 = smul.u32 16, %s26
          %1137 = vsyncadd %s1128, 0
          %s1138 = smul.addr %s1135, 8
          %s1139 = scalar_lea.hbm %s11, %s1138
          %s1140 = sshll.u32 %s1131, 4
          %s1141 = int_to_ptr.vmem [resolvable:$true] %s1140
          %s1142 = sshll.u32 %s1139, 4
          %s1143 = int_to_ptr.hbm [resolvable:$true] %s1142
          %1148 = dma.vmem_to_hbm [thread:$0]  %s1141, 2048, %s1143, %s1128, 128, 128, 8
        $region72: #{tpu_custom_call.1} parent=63 // pred_fallthru
          _
      $region64: #{tpu_custom_call.1} parent=5 // pred_fallthru
        _
      %p1149 = scmp.le.s32.totalorder 2, %s21
      // Predicated region
      $region73: #{tpu_custom_call.1} parent=5 // pred_check
        %p1150 = pneg %p1149
      $region74: #{tpu_custom_call.1} parent=5 // pred_check_branch
        %1152 = sbr.rel (%p1150) target = $region76
      $region75: #{tpu_custom_call.1} parent=5 // pred_region
        %s1153 = ssub.s32 %s21, 2
        // Predicated region
        $region77: #{tpu_custom_call.1} parent=75 // pred_check
          %p1154 = pneg %p291
        $region78: #{tpu_custom_call.1} parent=75 // pred_check_branch
          %1156 = sbr.rel (%p1154) target = $region80
        $region79: #{tpu_custom_call.1} parent=75 // pred_region
          %s1157 = sand.u32 %s276, 1
          %s1158 = scalar_lea.sflag [#allocation4], %s1157
          %s1159 = sand.u32 %s276, 1
          %s1160 = smul.addr %s1159, 128
          %s1161 = scalar_lea.vmem [#allocation5], %s1160
          %1163 = dma.done %s1158, 2048
        $region80: #{tpu_custom_call.1} parent=75 // pred_fallthru
          _
      $region76: #{tpu_custom_call.1} parent=5 // pred_fallthru
        _
    $region6: #{tpu_custom_call.1} parent=1 // loop_footer
      %s25 = sadd.s32 1, %s21
    $region7: #{tpu_custom_call.1} parent=1 // loop_footer_branch
      %20 = sbr.rel target = $region3
    $region8: #{tpu_custom_call.1} parent=1 // loop_exit
      _
    %1164 = vsyncpa [#allocation3], 1
    %s1165 = scalar_lea.sflag [#allocation3], 1
    %1166 = vsyncpa %s1165, 1
    %1167 = vsyncpa [#allocation4], 1
    %s1168 = scalar_lea.sflag [#allocation4], 1
    %1169 = vsyncpa %s1168, 1

</llo_original>
